<compile_context>
chip_gen: v7x
topology: tpu7x:2x2x1
jax: 0.10.0
libtpu: 0.0.40
codegen_flags: <defaults>
</compile_context>

<pallas_src>
import numpy as np
import jax
import jax.numpy as jnp
from jax.experimental import pallas as pl
from jax.experimental.pallas import tpu as pltpu

HIDDEN = 32                     # data.HP_hidden_dim
MAX_SPAN = 4                    # data.term_span
SPAN_LEN_EMB = 16               # data.spamEm_dim
FEATURE_DIM = 5 * HIDDEN + SPAN_LEN_EMB   # = 176
TERM_RATIO = 0.3                # data.termratio

NUM_CLASSES = 2                 # FeatVec2Class output width
REG_H1 = 200                    # spanRegression layer-1 width
REG_H2 = 100                    # spanRegression layer-2 width

ROW_TILE = 256                  # span-row tile (multiple of 8 sublanes, good MXU M)
W1_OUT = 256                    # fused layer-1 lanes: 32 (cls) + 200 (reg) + 24 pad
W2_OUT = 128                    # fused layer-2 lanes: 2 (logits) + 100 (reg h2) + 26 pad
OUT_LANES = 128                 # lane-dense output slab width
SCORE_LANE = NUM_CLASSES        # lane index of the sigmoid ranking score


def _heads_kernel(x_ref, w1_ref, b1_ref, w2_ref, b2_ref, w3_ref, b3_ref, out_ref):
    """Fused classification + ranking-regression heads for one row tile."""
    x = x_ref[...]                                                    # [TN, F] bf16

    # Fused first layer (classifier hidden ++ regression hidden), ReLU.
    y = jnp.dot(x, w1_ref[...], preferred_element_type=jnp.float32) + b1_ref[...]
    y = jnp.maximum(y, 0.0)                                           # [TN, 256] f32

    # Fused second layer: lanes 0:2 = classifier logits, lanes 2:102 = regression h2.
    z = jnp.dot(y.astype(jnp.bfloat16), w2_ref[...],
                preferred_element_type=jnp.float32) + b2_ref[...]     # [TN, 128] f32

    # Third regression layer (out-dim 1): VPU broadcast-mul + lane reduction (no MXU).
    s = jnp.sum(z * w3_ref[...], axis=-1, keepdims=True) + b3_ref[...]   # [TN, 1]
    score = jax.nn.sigmoid(s)

    # Lane-dense merged output: lanes 0:2 = logits, lane SCORE_LANE = sigmoid score,
    # remaining lanes carry don't-care values (never read by the wrapper).
    col = jax.lax.broadcasted_iota(jnp.int32, z.shape, 1)
    out_ref[...] = jnp.where(col == SCORE_LANE, score, z)


def fuse_params(params):
    """Pack the 10 per-layer tensors into 6 fused / zero-padded kernel operands."""
    cw1, cb1, cw2, cb2, rw1, rb1, rw2, rb2, rw3, rb3 = params
    f = cw1.shape[0]

    w1 = jnp.zeros((f, W1_OUT), jnp.float32)
    w1 = w1.at[:, :HIDDEN].set(cw1)
    w1 = w1.at[:, HIDDEN:HIDDEN + REG_H1].set(rw1)
    b1 = jnp.zeros((1, W1_OUT), jnp.float32)
    b1 = b1.at[:, :HIDDEN].set(cb1)
    b1 = b1.at[:, HIDDEN:HIDDEN + REG_H1].set(rb1)

    w2 = jnp.zeros((W1_OUT, W2_OUT), jnp.float32)
    w2 = w2.at[:HIDDEN, :NUM_CLASSES].set(cw2)
    w2 = w2.at[HIDDEN:HIDDEN + REG_H1, NUM_CLASSES:NUM_CLASSES + REG_H2].set(rw2)
    b2 = jnp.zeros((1, W2_OUT), jnp.float32)
    b2 = b2.at[:, :NUM_CLASSES].set(cb2)
    b2 = b2.at[:, NUM_CLASSES:NUM_CLASSES + REG_H2].set(rb2)

    w3 = jnp.zeros((1, W2_OUT), jnp.float32)
    w3 = w3.at[:, NUM_CLASSES:NUM_CLASSES + REG_H2].set(rw3.T)        # [1, 128]
    b3 = rb3.reshape(1, 1)

    # bf16 for the MXU operands; biases / VPU-side weight stay f32 (f32 accumulation).
    return (w1.astype(jnp.bfloat16), b1,
            w2.astype(jnp.bfloat16), b2,
            w3, b3)


def span_heads(span_embs, fused):
    """Run the fused classification + ranking-regression heads over all spans."""
    w1, b1, w2, b2, w3, b3 = fused
    n, f = span_embs.shape
    n_pad = ((n + ROW_TILE - 1) // ROW_TILE) * ROW_TILE
    x = jnp.pad(span_embs, ((0, n_pad - n), (0, 0))).astype(jnp.bfloat16)

    def const_spec(p):
        # Constant-index full-array block (weights resident across the row grid).
        return pl.BlockSpec(p.shape, lambda i: (0, 0))

    out = pl.pallas_call(
        _heads_kernel,
        grid=(n_pad // ROW_TILE,),
        in_specs=[pl.BlockSpec((ROW_TILE, f), lambda i: (i, 0)),
                  const_spec(w1), const_spec(b1),
                  const_spec(w2), const_spec(b2),
                  const_spec(w3), const_spec(b3)],
        out_specs=pl.BlockSpec((ROW_TILE, OUT_LANES), lambda i: (i, 0)),
        out_shape=jax.ShapeDtypeStruct((n_pad, OUT_LANES), jnp.float32),
        compiler_params=pltpu.CompilerParams(
            dimension_semantics=("parallel",)),
    )(x, w1, b1, w2, b2, w3, b3)

    logits = out[:n, :NUM_CLASSES]
    scores = out[:n, SCORE_LANE]
    return logits, scores


def get_candidate_span_pairs(seq_lengths, max_span):
    """Faithful (deterministically ordered) FeatureModel.get_candidate_span_pairs."""
    span_pairs = []
    for seq_len in seq_lengths:
        sent_pairs = []
        for start in range(seq_len):
            ends = [min(start + k, seq_len - 1) for k in range(max_span)]
            sent_pairs.extend(dict.fromkeys((start, e + 1) for e in ends))
        span_pairs.append(sent_pairs)
    return span_pairs


def nice_ranking_forward(span_embs, golden_mask, seq_lengths, fused_params):
    """Forward → (loss, rTP, rTPFP, rTPFN, cTP, cTPFP, cTPFN)."""
    logits, scores = span_heads(span_embs, fused_params)

    pred = jnp.argmax(logits, axis=-1)                      # PredResults
    cTPFP = pred.sum().astype(jnp.float32)
    cTP = jnp.where(golden_mask, pred, 0).sum().astype(jnp.float32)
    cTPFN = golden_mask.sum().astype(jnp.float32)

    classified = pred == 1                                  # globalIDs mask
    gold_cls = classified & golden_mask                     # goldenIDs (within classified)
    neg_cls = classified & (~golden_mask)                   # negative_IDs

    # Ranking loss: (1 - mean(score[golden])) + mean(score[negative]).
    # (torch would yield NaN on empty sets; clamp denominator for a stable demo)
    gold_mean = jnp.sum(jnp.where(gold_cls, scores, 0.0)) / jnp.maximum(gold_cls.sum(), 1)
    neg_mean = jnp.sum(jnp.where(neg_cls, scores, 0.0)) / jnp.maximum(neg_cls.sum(), 1)
    loss = (1.0 - gold_mean) + neg_mean

    # Top-K ranked spans among the classified set.  K is computed from the host-side
    # sentence lengths (static ints), so lax.top_k replaces the full argsort.
    # Note: as in the original, if K exceeds the classified count the extra (-inf)
    # entries still count toward rTPFP = K.
    k = int(np.floor(sum(int(s) for s in seq_lengths) * TERM_RATIO))
    k = max(0, min(k, scores.shape[0]))
    masked_scores = jnp.where(classified, scores, -jnp.inf)
    if k > 0:
        _, topk_idx = jax.lax.top_k(masked_scores, k)
        rTP = gold_cls[topk_idx].sum().astype(jnp.float32)
    else:
        rTP = jnp.asarray(0.0, jnp.float32)
    rTPFP = jnp.asarray(float(k), jnp.float32)
    rTPFN = gold_cls.sum().astype(jnp.float32)

    return loss, rTP, rTPFP, rTPFN, cTP, cTPFP, cTPFN


def _linear_params(key, fan_in, fan_out):
    kw, kb = jax.random.split(key)
    w = jax.random.normal(kw, (fan_in, fan_out), jnp.float32) / np.sqrt(fan_in)
    b = jax.random.normal(kb, (1, fan_out), jnp.float32) * 0.01
    return w, b


if __name__ == "__main__":
    key = jax.random.PRNGKey(0)
    keys = jax.random.split(key, 8)

    # Small synthetic batch: 2 sentences of lengths 8 and 6.
    seq_lengths = [8, 6]
    span_pairs = get_candidate_span_pairs(seq_lengths, MAX_SPAN)
    flat_pairs, flat_sent_ids = [], []
    for sid, pairs in enumerate(span_pairs):
        for p in pairs:
            flat_pairs.append(p)
            flat_sent_ids.append(sid)
    n_spans = len(flat_pairs)                      # 44 for lengths (8, 6), max_span=4

    # Golden spans per sentence (reformat_labels / getGoldIndex equivalent).
    golden_spans = [[(1, 3), (4, 5)], [(0, 2)]]
    golden_mask_np = np.zeros((n_spans,), dtype=bool)
    offset = 0
    for sid, pairs in enumerate(span_pairs):
        for g in golden_spans[sid]:
            if g in pairs:
                golden_mask_np[offset + pairs.index(g)] = True
        offset += len(pairs)

    # Synthetic span embeddings (stand-in for the FeatureModel output).
    span_embs = jax.random.normal(keys[0], (n_spans, FEATURE_DIM), jnp.float32)

    # Deterministic parameter init.
    cw1, cb1 = _linear_params(keys[1], FEATURE_DIM, HIDDEN)   # FeatVec2Class layer 1
    cw2, cb2 = _linear_params(keys[2], HIDDEN, NUM_CLASSES)   # FeatVec2Class layer 2
    rw1, rb1 = _linear_params(keys[3], FEATURE_DIM, REG_H1)   # spanRegression layer 1
    rw2, rb2 = _linear_params(keys[4], REG_H1, REG_H2)        # spanRegression layer 2
    rw3, rb3 = _linear_params(keys[5], REG_H2, 1)             # spanRegression layer 3
    params = (cw1, cb1, cw2, cb2, rw1, rb1, rw2, rb2, rw3, rb3)
    fused = fuse_params(params)

    golden_mask = jnp.asarray(golden_mask_np)

    out = nice_ranking_forward(span_embs, golden_mask, seq_lengths, fused)
    out = jax.block_until_ready(out)
    print("KERNEL_OK")
</pallas_src>

<mosaic_0001>
module attributes {stable_mosaic.version = 11 : i64} {
  func.func @_heads_kernel(%arg0: i32, %arg1: memref<256x176xbf16, #tpu.memory_space<vmem>>, %arg2: memref<176x256xbf16, #tpu.memory_space<vmem>>, %arg3: memref<1x256xf32, #tpu.memory_space<vmem>>, %arg4: memref<256x128xbf16, #tpu.memory_space<vmem>>, %arg5: memref<1x128xf32, #tpu.memory_space<vmem>>, %arg6: memref<1x128xf32, #tpu.memory_space<vmem>>, %arg7: memref<1x1xf32, #tpu.memory_space<vmem>>, %arg8: memref<256x128xf32, #tpu.memory_space<vmem>>) attributes {dimension_semantics = [#tpu.dimension_semantics<parallel>], iteration_bounds = array<i64: 1>, scalar_prefetch = 0 : i64, scratch_operands = 0 : i64, tpu.core_type = #tpu.core_type<tc>, window_params = [{transform_indices = @transform_0, window_bounds = array<i64: 256, 176>}, {pipeline_mode = #tpu.pipeline_mode<synchronous>, transform_indices = @transform_1, window_bounds = array<i64: 176, 256>}, {pipeline_mode = #tpu.pipeline_mode<synchronous>, transform_indices = @transform_2, window_bounds = array<i64: 1, 256>}, {pipeline_mode = #tpu.pipeline_mode<synchronous>, transform_indices = @transform_3, window_bounds = array<i64: 256, 128>}, {pipeline_mode = #tpu.pipeline_mode<synchronous>, transform_indices = @transform_4, window_bounds = array<i64: 1, 128>}, {pipeline_mode = #tpu.pipeline_mode<synchronous>, transform_indices = @transform_5, window_bounds = array<i64: 1, 128>}, {pipeline_mode = #tpu.pipeline_mode<synchronous>, transform_indices = @transform_6, window_bounds = array<i64: 1, 1>}, {transform_indices = @transform_7, window_bounds = array<i64: 256, 128>}]} {
    %c0 = arith.constant 0 : index
    %c0_0 = arith.constant 0 : index
    %0 = vector.load %arg1[%c0, %c0_0] : memref<256x176xbf16, #tpu.memory_space<vmem>>, vector<256x176xbf16>
    %c0_1 = arith.constant 0 : index
    %c0_2 = arith.constant 0 : index
    %1 = vector.load %arg2[%c0_1, %c0_2] : memref<176x256xbf16, #tpu.memory_space<vmem>>, vector<176x256xbf16>
    %cst = arith.constant dense<0.000000e+00> : vector<256x256xf32>
    %2 = tpu.matmul %0, %1, %cst {dimension_numbers = #tpu.dot_dimension_numbers<[1], [0], [0], [1], [0, 0, 1, 1], [], []>} : vector<256x176xbf16>, vector<176x256xbf16>, vector<256x256xf32> -> vector<256x256xf32>
    %c0_3 = arith.constant 0 : index
    %c0_4 = arith.constant 0 : index
    %3 = vector.load %arg3[%c0_3, %c0_4] : memref<1x256xf32, #tpu.memory_space<vmem>>, vector<1x256xf32>
    %4 = vector.broadcast %3 : vector<1x256xf32> to vector<256x256xf32>
    %5 = arith.addf %2, %4 : vector<256x256xf32>
    %cst_5 = arith.constant 0.000000e+00 : f32
    %6 = vector.broadcast %cst_5 : f32 to vector<256x256xf32>
    %7 = arith.maximumf %5, %6 : vector<256x256xf32>
    %8 = arith.truncf %7 : vector<256x256xf32> to vector<256x256xbf16>
    %c0_6 = arith.constant 0 : index
    %c0_7 = arith.constant 0 : index
    %9 = vector.load %arg4[%c0_6, %c0_7] : memref<256x128xbf16, #tpu.memory_space<vmem>>, vector<256x128xbf16>
    %cst_8 = arith.constant dense<0.000000e+00> : vector<256x128xf32>
    %10 = tpu.matmul %8, %9, %cst_8 {dimension_numbers = #tpu.dot_dimension_numbers<[1], [0], [0], [1], [0, 0, 1, 1], [], []>} : vector<256x256xbf16>, vector<256x128xbf16>, vector<256x128xf32> -> vector<256x128xf32>
    %c0_9 = arith.constant 0 : index
    %c0_10 = arith.constant 0 : index
    %11 = vector.load %arg5[%c0_9, %c0_10] : memref<1x128xf32, #tpu.memory_space<vmem>>, vector<1x128xf32>
    %12 = vector.broadcast %11 : vector<1x128xf32> to vector<256x128xf32>
    %13 = arith.addf %10, %12 : vector<256x128xf32>
    %c0_11 = arith.constant 0 : index
    %c0_12 = arith.constant 0 : index
    %14 = vector.load %arg6[%c0_11, %c0_12] : memref<1x128xf32, #tpu.memory_space<vmem>>, vector<1x128xf32>
    %15 = vector.broadcast %14 : vector<1x128xf32> to vector<256x128xf32>
    %16 = arith.mulf %13, %15 : vector<256x128xf32>
    %cst_13 = arith.constant dense<0.000000e+00> : vector<256xf32>
    %17 = vector.multi_reduction <add>, %16, %cst_13 [1] : vector<256x128xf32> to vector<256xf32>
    %18 = vector.shape_cast %17 : vector<256xf32> to vector<256x1xf32>
    %c0_14 = arith.constant 0 : index
    %c0_15 = arith.constant 0 : index
    %19 = vector.load %arg7[%c0_14, %c0_15] : memref<1x1xf32, #tpu.memory_space<vmem>>, vector<1x1xf32>
    %20 = vector.broadcast %19 : vector<1x1xf32> to vector<256x1xf32>
    %21 = arith.addf %18, %20 : vector<256x1xf32>
    %22 = arith.negf %21 : vector<256x1xf32>
    %23 = math.exp %22 : vector<256x1xf32>
    %cst_16 = arith.constant 1.000000e+00 : f32
    %24 = vector.broadcast %cst_16 : f32 to vector<256x1xf32>
    %25 = arith.addf %24, %23 : vector<256x1xf32>
    %26 = arith.divf %24, %25 : vector<256x1xf32>
    %27 = tpu.iota {dimensions = array<i32: 1>} : vector<256x128xi32>
    %c2_i32 = arith.constant 2 : i32
    %28 = vector.broadcast %c2_i32 : i32 to vector<256x128xi32>
    %29 = arith.cmpi eq, %27, %28 : vector<256x128xi32>
    %30 = vector.shape_cast %26 : vector<256x1xf32> to vector<256x1xf32>
    %31 = vector.broadcast %30 : vector<256x1xf32> to vector<256x128xf32>
    %32 = arith.select %29, %31, %13 : vector<256x128xi1>, vector<256x128xf32>
    %c0_17 = arith.constant 0 : index
    %c0_18 = arith.constant 0 : index
    %33 = vector.load %arg8[%c0_17, %c0_18] : memref<256x128xf32, #tpu.memory_space<vmem>>, vector<256x128xf32>
    tpu.vector_store %arg8[%c0_17, %c0_18], %32 {strides = array<i32>} : memref<256x128xf32, #tpu.memory_space<vmem>>, vector<256x128xf32>,
    return
  }
  func.func @transform_0(%arg0: i32) -> (i32, i32) {
    %c0_i32 = arith.constant 0 : i32
    %c0_i32_0 = arith.constant 0 : i32
    return %arg0, %c0_i32 : i32, i32
  }
  func.func @transform_1(%arg0: i32) -> (i32, i32) {
    %c0_i32 = arith.constant 0 : i32
    %c0_i32_0 = arith.constant 0 : i32
    %c0_i32_1 = arith.constant 0 : i32
    return %c0_i32, %c0_i32_0 : i32, i32
  }
  func.func @transform_2(%arg0: i32) -> (i32, i32) {
    %c0_i32 = arith.constant 0 : i32
    %c0_i32_0 = arith.constant 0 : i32
    %c0_i32_1 = arith.constant 0 : i32
    return %c0_i32, %c0_i32_0 : i32, i32
  }
  func.func @transform_3(%arg0: i32) -> (i32, i32) {
    %c0_i32 = arith.constant 0 : i32
    %c0_i32_0 = arith.constant 0 : i32
    %c0_i32_1 = arith.constant 0 : i32
    return %c0_i32, %c0_i32_0 : i32, i32
  }
  func.func @transform_4(%arg0: i32) -> (i32, i32) {
    %c0_i32 = arith.constant 0 : i32
    %c0_i32_0 = arith.constant 0 : i32
    %c0_i32_1 = arith.constant 0 : i32
    return %c0_i32, %c0_i32_0 : i32, i32
  }
  func.func @transform_5(%arg0: i32) -> (i32, i32) {
    %c0_i32 = arith.constant 0 : i32
    %c0_i32_0 = arith.constant 0 : i32
    %c0_i32_1 = arith.constant 0 : i32
    return %c0_i32, %c0_i32_0 : i32, i32
  }
  func.func @transform_6(%arg0: i32) -> (i32, i32) {
    %c0_i32 = arith.constant 0 : i32
    %c0_i32_0 = arith.constant 0 : i32
    %c0_i32_1 = arith.constant 0 : i32
    return %c0_i32, %c0_i32_0 : i32, i32
  }
  func.func @transform_7(%arg0: i32) -> (i32, i32) {
    %c0_i32 = arith.constant 0 : i32
    %c0_i32_0 = arith.constant 0 : i32
    return %arg0, %c0_i32 : i32, i32
  }
}

</mosaic_0001>

<llo_original>
// kernel: tpu_custom_call.1
$region0: #{tpu_custom_call.1}
  #allocation0 [shape = 'u32[]', space=smem, size = 0x4, offset = 0x4, fixed_abs, tag = 'smem constant byte address 0x4 - core index']
  #allocation1 [shape = 'u32[144,128]{1,0:T(1,128)}', space=vmem, size = 0x12000, scoped, tag = 'internal scratch']
  #allocation2 [shape = 'f32[1,1]{1,0:T(1,128)S(1)}', space=vmem, size = 0x200, scoped, tag = 'scoped memory for tpu_custom_call.1']
  %s0 = inlined_call_operand.vmem [shape: bf16[256,176], index: 0, kind: input, shape index: {}]
  %s1 = inlined_call_operand.vmem [shape: bf16[176,256], index: 1, kind: input, shape index: {}]
  %s2 = inlined_call_operand.vmem [shape: f32[1,256], index: 2, kind: input, shape index: {}]
  %s3 = inlined_call_operand.vmem [shape: bf16[256,128], index: 3, kind: input, shape index: {}]
  %s4 = inlined_call_operand.vmem [shape: f32[1,128], index: 4, kind: input, shape index: {}]
  %s5 = inlined_call_operand.vmem [shape: f32[1,128], index: 5, kind: input, shape index: {}]
  %s6 = inlined_call_operand.<no memory space> [shape: f32[1,1], index: 6, kind: input, shape index: {}]
  %s7 = inlined_call_operand.hbm [shape: f32[256,128], index: 7, kind: output, shape index: {}]
  %s8 = sld [smem:[#allocation0]]
  $region38: #{tpu_custom_call.1} parent=0
    _
  %s10 = ssub.s32 1, %s8
  %s11 = scalar_select 0, %s10, %s8
  %v12 = vstv %s6
  %13 = vst [vmem:[#allocation2] sm:$0x1] %v12
  $region1: #{tpu_custom_call.1} parent=0
    #allocation3 [shape = 'u8[131072]{0}', space=vmem, size = 0x20000, scoped, tag = 'output window, operand 0, single buffered']
    #allocation4 [shape = 's32[1]{0}', space=sflag, size = 0x4, scoped, tag = 'scoped memory for tpu_custom_call.1']
    %14 = vsyncpa [#allocation4], 0
    // Predicated region
    $region2: #{tpu_custom_call.1} parent=1 // pred_check
      _
    $region3: #{tpu_custom_call.1} parent=1 // pred_check_branch
      %16 = sbr.rel (0) target = $region5
    $region4: #{tpu_custom_call.1} parent=1 // pred_region
      _
    $region5: #{tpu_custom_call.1} parent=1 // pred_fallthru
      _
    // Predicated region
    $region6: #{tpu_custom_call.1} parent=1 // pred_check
      _
    $region7: #{tpu_custom_call.1} parent=1 // pred_check_branch
      %18 = sbr.rel (0) target = $region9
    $region8: #{tpu_custom_call.1} parent=1 // pred_region
      _
    $region9: #{tpu_custom_call.1} parent=1 // pred_fallthru
      _
    // Predicated region
    $region10: #{tpu_custom_call.1} parent=1 // pred_check
      _
    $region11: #{tpu_custom_call.1} parent=1 // pred_check_branch
      %20 = sbr.rel (0) target = $region13
    $region12: #{tpu_custom_call.1} parent=1 // pred_region
      _
    $region13: #{tpu_custom_call.1} parent=1 // pred_fallthru
      _
    // Predicated region
    $region14: #{tpu_custom_call.1} parent=1 // pred_check
      _
    $region15: #{tpu_custom_call.1} parent=1 // pred_check_branch
      %22 = sbr.rel (0) target = $region17
    $region16: #{tpu_custom_call.1} parent=1 // pred_region
      _
    $region17: #{tpu_custom_call.1} parent=1 // pred_fallthru
      _
    // Predicated region
    $region18: #{tpu_custom_call.1} parent=1 // pred_check
      _
    $region19: #{tpu_custom_call.1} parent=1 // pred_check_branch
      %24 = sbr.rel (0) target = $region21
    $region20: #{tpu_custom_call.1} parent=1 // pred_region
      _
    $region21: #{tpu_custom_call.1} parent=1 // pred_fallthru
      _
    // Predicated region
    $region22: #{tpu_custom_call.1} parent=1 // pred_check
      _
    $region23: #{tpu_custom_call.1} parent=1 // pred_check_branch
      %26 = sbr.rel (0) target = $region25
    $region24: #{tpu_custom_call.1} parent=1 // pred_region
      _
    $region25: #{tpu_custom_call.1} parent=1 // pred_fallthru
      _
    // Predicated region
    $region26: #{tpu_custom_call.1} parent=1 // pred_check
      _
    $region27: #{tpu_custom_call.1} parent=1 // pred_check_branch
      %28 = sbr.rel (0) target = $region29
    $region28: #{tpu_custom_call.1} parent=1 // pred_region
      _
    $region29: #{tpu_custom_call.1} parent=1 // pred_fallthru
      _
    %v30 = vld [vmem:[%s0] sm:$0xff]
    %v31 = vld [vmem:[%s0 + $0x8] sm:$0xff]
    %v32 = vld [vmem:[%s0 + $0x10] sm:$0xff]
    %v33 = vld [vmem:[%s0 + $0x18] sm:$0xff]
    %v34 = vld [vmem:[%s0 + $0x20] sm:$0xff]
    %v35 = vld [vmem:[%s0 + $0x28] sm:$0xff]
    %v36 = vld [vmem:[%s0 + $0x30] sm:$0xff]
    %v37 = vld [vmem:[%s0 + $0x38] sm:$0xff]
    %v38 = vld [vmem:[%s0 + $0x40] sm:$0xff]
    %v39 = vld [vmem:[%s0 + $0x48] sm:$0xff]
    %v40 = vld [vmem:[%s0 + $0x50] sm:$0xff]
    %v41 = vld [vmem:[%s0 + $0x58] sm:$0xff]
    %v42 = vld [vmem:[%s0 + $0x60] sm:$0xff]
    %v43 = vld [vmem:[%s0 + $0x68] sm:$0xff]
    %v44 = vld [vmem:[%s0 + $0x70] sm:$0xff]
    %v45 = vld [vmem:[%s0 + $0x78] sm:$0xff]
    %v46 = vld [vmem:[%s0 + $0x80] sm:$0xff]
    %v47 = vld [vmem:[%s0 + $0x88] sm:$0xff]
    %v48 = vld [vmem:[%s0 + $0x90] sm:$0xff]
    %v49 = vld [vmem:[%s0 + $0x98] sm:$0xff]
    %v50 = vld [vmem:[%s0 + $0xa0] sm:$0xff]
    %v51 = vld [vmem:[%s0 + $0xa8] sm:$0xff]
    %v52 = vld [vmem:[%s0 + $0xb0] sm:$0xff]
    %v53 = vld [vmem:[%s0 + $0xb8] sm:$0xff]
    %v54 = vld [vmem:[%s0 + $0xc0] sm:$0xff]
    %v55 = vld [vmem:[%s0 + $0xc8] sm:$0xff]
    %v56 = vld [vmem:[%s0 + $0xd0] sm:$0xff]
    %v57 = vld [vmem:[%s0 + $0xd8] sm:$0xff]
    %v58 = vld [vmem:[%s0 + $0xe0] sm:$0xff]
    %v59 = vld [vmem:[%s0 + $0xe8] sm:$0xff]
    %v60 = vld [vmem:[%s0 + $0xf0] sm:$0xff]
    %v61 = vld [vmem:[%s0 + $0xf8] sm:$0xff]
    %v62 = vld [vmem:[%s1] sm:$0xff]
    %v63 = vld [vmem:[%s1 + $0x8] sm:$0xff]
    %v64 = vld [vmem:[%s1 + $0x10] sm:$0xff]
    %v65 = vld [vmem:[%s1 + $0x18] sm:$0xff]
    %v66 = vld [vmem:[%s1 + $0x20] sm:$0xff]
    %v67 = vld [vmem:[%s1 + $0x28] sm:$0xff]
    %v68 = vld [vmem:[%s1 + $0x30] sm:$0xff]
    %v69 = vld [vmem:[%s1 + $0x38] sm:$0xff]
    %v70 = vld [vmem:[%s1 + $0x40] sm:$0xff]
    %v71 = vld [vmem:[%s1 + $0x48] sm:$0xff]
    %v72 = vld [vmem:[%s1 + $0x50] sm:$0xff]
    %v73 = vld [vmem:[%s1 + $0x58] sm:$0xff]
    %v74 = vld [vmem:[%s1 + $0x60] sm:$0xff]
    %v75 = vld [vmem:[%s1 + $0x68] sm:$0xff]
    %v76 = vld [vmem:[%s1 + $0x70] sm:$0xff]
    %v77 = vld [vmem:[%s1 + $0x78] sm:$0xff]
    %v78 = vld [vmem:[%s1 + $0x80] sm:$0xff]
    %v79 = vld [vmem:[%s1 + $0x88] sm:$0xff]
    %v80 = vld [vmem:[%s1 + $0x90] sm:$0xff]
    %v81 = vld [vmem:[%s1 + $0x98] sm:$0xff]
    %v82 = vld [vmem:[%s1 + $0xa0] sm:$0xff]
    %v83 = vld [vmem:[%s1 + $0xa8] sm:$0xff]
    %v84 = vld [vmem:[%s2] sm:$0x3]
    %v86 = vlaneseq
    %v87 = vshrl.u32 %v86, 7
    %v88 = vsub.s32 0, %v87
    %v89 = vrot.slane %v84, %v88
    %v90 = vlaneseq
    %v91 = vshrl.u32 %v90, 7
    %v92 = vsub.s32 1, %v91
    %v93 = vrot.slane %v84, %v92
    %v128 = vunpack.c.l.b16 %v30
    %v129 = vunpack.c.h.b16 %v30
    %v130 = vunpack.c.l.b16 %v31
    %v131 = vunpack.c.h.b16 %v31
    %v132 = vunpack.c.l.b16 %v32
    %v133 = vunpack.c.h.b16 %v32
    %v134 = vunpack.c.l.b16 %v33
    %v135 = vunpack.c.h.b16 %v33
    %v136 = vunpack.c.l.b16 %v34
    %v137 = vunpack.c.h.b16 %v34
    %v138 = vunpack.c.l.b16 %v35
    %v139 = vunpack.c.h.b16 %v35
    %v140 = vunpack.c.l.b16 %v36
    %v141 = vunpack.c.h.b16 %v36
    %v142 = vunpack.c.l.b16 %v37
    %v143 = vunpack.c.h.b16 %v37
    %v144 = vunpack.c.l.b16 %v38
    %v145 = vunpack.c.h.b16 %v38
    %v146 = vunpack.c.l.b16 %v39
    %v147 = vunpack.c.h.b16 %v39
    %v148 = vunpack.c.l.b16 %v40
    %v149 = vunpack.c.h.b16 %v40
    %v150 = vunpack.c.l.b16 %v41
    %v151 = vunpack.c.h.b16 %v41
    %v152 = vunpack.c.l.b16 %v42
    %v153 = vunpack.c.h.b16 %v42
    %v154 = vunpack.c.l.b16 %v43
    %v155 = vunpack.c.h.b16 %v43
    %v156 = vunpack.c.l.b16 %v44
    %v157 = vunpack.c.h.b16 %v44
    %v158 = vunpack.c.l.b16 %v45
    %v159 = vunpack.c.h.b16 %v45
    %v160 = vunpack.c.l.b16 %v46
    %v161 = vunpack.c.h.b16 %v46
    %v162 = vunpack.c.l.b16 %v47
    %v163 = vunpack.c.h.b16 %v47
    %v164 = vunpack.c.l.b16 %v48
    %v165 = vunpack.c.h.b16 %v48
    %v166 = vunpack.c.l.b16 %v49
    %v167 = vunpack.c.h.b16 %v49
    %v168 = vunpack.c.l.b16 %v50
    %v169 = vunpack.c.h.b16 %v50
    %v170 = vunpack.c.l.b16 %v51
    %v171 = vunpack.c.h.b16 %v51
    %v172 = vunpack.c.l.b16 %v52
    %v173 = vunpack.c.h.b16 %v52
    %v174 = vunpack.c.l.b16 %v53
    %v175 = vunpack.c.h.b16 %v53
    %v176 = vunpack.c.l.b16 %v54
    %v177 = vunpack.c.h.b16 %v54
    %v178 = vunpack.c.l.b16 %v55
    %v179 = vunpack.c.h.b16 %v55
    %v180 = vunpack.c.l.b16 %v56
    %v181 = vunpack.c.h.b16 %v56
    %v182 = vunpack.c.l.b16 %v57
    %v183 = vunpack.c.h.b16 %v57
    %v184 = vunpack.c.l.b16 %v58
    %v185 = vunpack.c.h.b16 %v58
    %v186 = vunpack.c.l.b16 %v59
    %v187 = vunpack.c.h.b16 %v59
    %v188 = vunpack.c.l.b16 %v60
    %v189 = vunpack.c.h.b16 %v60
    %v190 = vunpack.c.l.b16 %v61
    %v191 = vunpack.c.h.b16 %v61
    %v192 = vpack.c.b16 %v130, %v128
    %v193 = vpack.c.b16 %v131, %v129
    %v194 = vpack.c.b16 %v134, %v132
    %v195 = vpack.c.b16 %v135, %v133
    %v196 = vpack.c.b16 %v138, %v136
    %v197 = vpack.c.b16 %v139, %v137
    %v198 = vpack.c.b16 %v142, %v140
    %v199 = vpack.c.b16 %v143, %v141
    %v200 = vpack.c.b16 %v146, %v144
    %v201 = vpack.c.b16 %v147, %v145
    %v202 = vpack.c.b16 %v150, %v148
    %v203 = vpack.c.b16 %v151, %v149
    %v204 = vpack.c.b16 %v154, %v152
    %v205 = vpack.c.b16 %v155, %v153
    %v206 = vpack.c.b16 %v158, %v156
    %v207 = vpack.c.b16 %v159, %v157
    %v208 = vpack.c.b16 %v162, %v160
    %v209 = vpack.c.b16 %v163, %v161
    %v210 = vpack.c.b16 %v166, %v164
    %v211 = vpack.c.b16 %v167, %v165
    %v212 = vpack.c.b16 %v170, %v168
    %v213 = vpack.c.b16 %v171, %v169
    %v214 = vpack.c.b16 %v174, %v172
    %v215 = vpack.c.b16 %v175, %v173
    %v216 = vpack.c.b16 %v178, %v176
    %v217 = vpack.c.b16 %v179, %v177
    %v218 = vpack.c.b16 %v182, %v180
    %v219 = vpack.c.b16 %v183, %v181
    %v220 = vpack.c.b16 %v186, %v184
    %v221 = vpack.c.b16 %v187, %v185
    %v222 = vpack.c.b16 %v190, %v188
    %v223 = vpack.c.b16 %v191, %v189
    %v262 = vunpack.c.l.b16 %v62
    %v263 = vunpack.c.h.b16 %v62
    %v264 = vunpack.c.l.b16 %v63
    %v265 = vunpack.c.h.b16 %v63
    %v266 = vunpack.c.l.b16 %v64
    %v267 = vunpack.c.h.b16 %v64
    %v268 = vunpack.c.l.b16 %v65
    %v269 = vunpack.c.h.b16 %v65
    %v270 = vunpack.c.l.b16 %v66
    %v271 = vunpack.c.h.b16 %v66
    %v272 = vunpack.c.l.b16 %v67
    %v273 = vunpack.c.h.b16 %v67
    %v274 = vunpack.c.l.b16 %v68
    %v275 = vunpack.c.h.b16 %v68
    %v276 = vunpack.c.l.b16 %v69
    %v277 = vunpack.c.h.b16 %v69
    %v278 = vunpack.c.l.b16 %v70
    %v279 = vunpack.c.h.b16 %v70
    %v280 = vunpack.c.l.b16 %v71
    %v281 = vunpack.c.h.b16 %v71
    %v282 = vunpack.c.l.b16 %v72
    %v283 = vunpack.c.h.b16 %v72
    %v284 = vunpack.c.l.b16 %v73
    %v285 = vunpack.c.h.b16 %v73
    %v286 = vunpack.c.l.b16 %v74
    %v287 = vunpack.c.h.b16 %v74
    %v288 = vunpack.c.l.b16 %v75
    %v289 = vunpack.c.h.b16 %v75
    %v290 = vunpack.c.l.b16 %v76
    %v291 = vunpack.c.h.b16 %v76
    %v292 = vunpack.c.l.b16 %v77
    %v293 = vunpack.c.h.b16 %v77
    %v294 = vunpack.c.l.b16 %v78
    %v295 = vunpack.c.h.b16 %v78
    %v296 = vunpack.c.l.b16 %v79
    %v297 = vunpack.c.h.b16 %v79
    %v298 = vunpack.c.l.b16 %v80
    %v299 = vunpack.c.h.b16 %v80
    %v300 = vunpack.c.l.b16 %v81
    %v301 = vunpack.c.h.b16 %v81
    %v302 = vunpack.c.l.b16 %v82
    %v303 = vunpack.c.h.b16 %v82
    %v304 = vunpack.c.l.b16 %v83
    %v305 = vunpack.c.h.b16 %v83
    %v306 = vpack.c.b16 %v264, %v262
    %v307 = vpack.c.b16 %v265, %v263
    %v308 = vpack.c.b16 %v268, %v266
    %v309 = vpack.c.b16 %v269, %v267
    %v310 = vpack.c.b16 %v272, %v270
    %v311 = vpack.c.b16 %v273, %v271
    %v312 = vpack.c.b16 %v276, %v274
    %v313 = vpack.c.b16 %v277, %v275
    %v314 = vpack.c.b16 %v280, %v278
    %v315 = vpack.c.b16 %v281, %v279
    %v316 = vpack.c.b16 %v284, %v282
    %v317 = vpack.c.b16 %v285, %v283
    %v318 = vpack.c.b16 %v288, %v286
    %v319 = vpack.c.b16 %v289, %v287
    %v320 = vpack.c.b16 %v292, %v290
    %v321 = vpack.c.b16 %v293, %v291
    %v322 = vpack.c.b16 %v296, %v294
    %v323 = vpack.c.b16 %v297, %v295
    %v324 = vpack.c.b16 %v300, %v298
    %v325 = vpack.c.b16 %v301, %v299
    %v326 = vpack.c.b16 %v304, %v302
    %v327 = vpack.c.b16 %v305, %v303
    %vm350 = vcmask 392192
    %v352 = vsel %vm350, %v193, 0
    %v355 = vsel %vm350, %v195, 0
    %v358 = vsel %vm350, %v197, 0
    %v361 = vsel %vm350, %v199, 0
    %v364 = vsel %vm350, %v201, 0
    %v367 = vsel %vm350, %v203, 0
    %v370 = vsel %vm350, %v205, 0
    %v373 = vsel %vm350, %v207, 0
    %v376 = vsel %vm350, %v209, 0
    %v379 = vsel %vm350, %v211, 0
    %v382 = vsel %vm350, %v213, 0
    %v385 = vsel %vm350, %v215, 0
    %v388 = vsel %vm350, %v217, 0
    %v391 = vsel %vm350, %v219, 0
    %v394 = vsel %vm350, %v221, 0
    %v397 = vsel %vm350, %v223, 0
    %399 = vmatprep.subr.bf16.mxu0 %v307
    %400 = vmatpush1.bf16.msra.mxu0 %v306
    %401 = vmatprep.subr.bf16.mxu0 %v309
    %402 = vmatpush1.bf16.msra.mxu0 %v308
    %403 = vmatprep.subr.bf16.mxu0 %v311
    %404 = vmatpush1.bf16.msra.mxu0 %v310
    %405 = vmatprep.subr.bf16.mxu0 %v313
    %406 = vmatpush1.bf16.msra.mxu0 %v312
    %407 = vmatprep.subr.bf16.mxu0 %v315
    %408 = vmatpush1.bf16.msra.mxu0 %v314
    %409 = vmatprep.subr.bf16.mxu0 %v317
    %410 = vmatpush1.bf16.msra.mxu0 %v316
    %411 = vmatprep.subr.bf16.mxu0 %v319
    %412 = vmatpush1.bf16.msra.mxu0 %v318
    %413 = vmatprep.subr.bf16.mxu0 %v321
    %414 = vmatpush1.bf16.msra.mxu0 %v320
    %415 = vmatprep.subr.bf16.mxu0 %v323
    %416 = vmatpush1.bf16.msra.mxu0 %v322
    %417 = vmatprep.subr.bf16.mxu0 %v325
    %418 = vmatpush1.bf16.msra.mxu0 %v324
    %419 = vmatprep.subr.bf16.mxu0 %v327
    %420 = vmatpush1.bf16.msra.mxu0 %v326
    %421 = vmatprep.subr.bf16.mxu0 0
    %422 = vmatpush1.bf16.msra.mxu0 0
    %423 = vmatprep.subr.bf16.mxu0 0
    %424 = vmatpush1.bf16.msra.mxu0 0
    %425 = vmatprep.subr.bf16.mxu0 0
    %426 = vmatpush1.bf16.msra.mxu0 0
    %427 = vmatprep.subr.bf16.mxu0 0
    %428 = vmatpush1.bf16.msra.mxu0 0
    %429 = vmatprep.subr.bf16.mxu0 0
    %430 = vmatpush1.bf16.msra.mxu0 0
    %431 = vmatprep.mubr.bf16.mxu0 %v352
    %432 = vmatmul.mubr.bf16.gmra.mrb[0].mxu0 %v192
    %v433 = vpop.f32.mrb[0].mxu0
    %v434 = vadd.f32 %v89, %v433
    %v435 = vpop.f32.mrb[0].mxu0
    %v436 = vadd.f32 %v93, %v435
    %v437 = vpop.f32.mrb[0].mxu0
    %v438 = vadd.f32 %v89, %v437
    %v439 = vpop.f32.mrb[0].mxu0
    %v440 = vadd.f32 %v93, %v439
    %441 = vmatprep.mubr.bf16.mxu0 %v355
    %442 = vmatmul.mubr.bf16.gmra.mrb[0].mxu0 %v194
    %v443 = vpop.f32.mrb[0].mxu0
    %v444 = vadd.f32 %v89, %v443
    %v445 = vpop.f32.mrb[0].mxu0
    %v446 = vadd.f32 %v93, %v445
    %v447 = vpop.f32.mrb[0].mxu0
    %v448 = vadd.f32 %v89, %v447
    %v449 = vpop.f32.mrb[0].mxu0
    %v450 = vadd.f32 %v93, %v449
    %451 = vmatprep.mubr.bf16.mxu0 %v358
    %452 = vmatmul.mubr.bf16.gmra.mrb[0].mxu0 %v196
    %v453 = vpop.f32.mrb[0].mxu0
    %v454 = vadd.f32 %v89, %v453
    %v455 = vpop.f32.mrb[0].mxu0
    %v456 = vadd.f32 %v93, %v455
    %v457 = vpop.f32.mrb[0].mxu0
    %v458 = vadd.f32 %v89, %v457
    %v459 = vpop.f32.mrb[0].mxu0
    %v460 = vadd.f32 %v93, %v459
    %461 = vmatprep.mubr.bf16.mxu0 %v361
    %462 = vmatmul.mubr.bf16.gmra.mrb[0].mxu0 %v198
    %v463 = vpop.f32.mrb[0].mxu0
    %v464 = vadd.f32 %v89, %v463
    %v465 = vpop.f32.mrb[0].mxu0
    %v466 = vadd.f32 %v93, %v465
    %v467 = vpop.f32.mrb[0].mxu0
    %v468 = vadd.f32 %v89, %v467
    %v469 = vpop.f32.mrb[0].mxu0
    %v470 = vadd.f32 %v93, %v469
    %471 = vmatprep.mubr.bf16.mxu0 %v364
    %472 = vmatmul.mubr.bf16.gmra.mrb[0].mxu0 %v200
    %v473 = vpop.f32.mrb[0].mxu0
    %v474 = vadd.f32 %v89, %v473
    %v475 = vpop.f32.mrb[0].mxu0
    %v476 = vadd.f32 %v93, %v475
    %v477 = vpop.f32.mrb[0].mxu0
    %v478 = vadd.f32 %v89, %v477
    %v479 = vpop.f32.mrb[0].mxu0
    %v480 = vadd.f32 %v93, %v479
    %481 = vmatprep.mubr.bf16.mxu0 %v367
    %482 = vmatmul.mubr.bf16.gmra.mrb[0].mxu0 %v202
    %v483 = vpop.f32.mrb[0].mxu0
    %v484 = vadd.f32 %v89, %v483
    %v485 = vpop.f32.mrb[0].mxu0
    %v486 = vadd.f32 %v93, %v485
    %v487 = vpop.f32.mrb[0].mxu0
    %v488 = vadd.f32 %v89, %v487
    %v489 = vpop.f32.mrb[0].mxu0
    %v490 = vadd.f32 %v93, %v489
    %491 = vmatprep.mubr.bf16.mxu0 %v370
    %492 = vmatmul.mubr.bf16.gmra.mrb[0].mxu0 %v204
    %v493 = vpop.f32.mrb[0].mxu0
    %v494 = vadd.f32 %v89, %v493
    %v495 = vpop.f32.mrb[0].mxu0
    %v496 = vadd.f32 %v93, %v495
    %v497 = vpop.f32.mrb[0].mxu0
    %v498 = vadd.f32 %v89, %v497
    %v499 = vpop.f32.mrb[0].mxu0
    %v500 = vadd.f32 %v93, %v499
    %501 = vmatprep.mubr.bf16.mxu0 %v373
    %502 = vmatmul.mubr.bf16.gmra.mrb[0].mxu0 %v206
    %v503 = vpop.f32.mrb[0].mxu0
    %v504 = vadd.f32 %v89, %v503
    %v505 = vpop.f32.mrb[0].mxu0
    %v506 = vadd.f32 %v93, %v505
    %v507 = vpop.f32.mrb[0].mxu0
    %v508 = vadd.f32 %v89, %v507
    %v509 = vpop.f32.mrb[0].mxu0
    %v510 = vadd.f32 %v93, %v509
    %511 = vmatprep.mubr.bf16.mxu0 %v376
    %512 = vmatmul.mubr.bf16.gmra.mrb[0].mxu0 %v208
    %v513 = vpop.f32.mrb[0].mxu0
    %v514 = vadd.f32 %v89, %v513
    %v515 = vpop.f32.mrb[0].mxu0
    %v516 = vadd.f32 %v93, %v515
    %v517 = vpop.f32.mrb[0].mxu0
    %v518 = vadd.f32 %v89, %v517
    %v519 = vpop.f32.mrb[0].mxu0
    %v520 = vadd.f32 %v93, %v519
    %521 = vmatprep.mubr.bf16.mxu0 %v379
    %522 = vmatmul.mubr.bf16.gmra.mrb[0].mxu0 %v210
    %v523 = vpop.f32.mrb[0].mxu0
    %v524 = vadd.f32 %v89, %v523
    %v525 = vpop.f32.mrb[0].mxu0
    %v526 = vadd.f32 %v93, %v525
    %v527 = vpop.f32.mrb[0].mxu0
    %v528 = vadd.f32 %v89, %v527
    %v529 = vpop.f32.mrb[0].mxu0
    %v530 = vadd.f32 %v93, %v529
    %531 = vmatprep.mubr.bf16.mxu0 %v382
    %532 = vmatmul.mubr.bf16.gmra.mrb[0].mxu0 %v212
    %v533 = vpop.f32.mrb[0].mxu0
    %v534 = vadd.f32 %v89, %v533
    %v535 = vpop.f32.mrb[0].mxu0
    %v536 = vadd.f32 %v93, %v535
    %v537 = vpop.f32.mrb[0].mxu0
    %v538 = vadd.f32 %v89, %v537
    %v539 = vpop.f32.mrb[0].mxu0
    %v540 = vadd.f32 %v93, %v539
    %541 = vmatprep.mubr.bf16.mxu0 %v385
    %542 = vmatmul.mubr.bf16.gmra.mrb[0].mxu0 %v214
    %v543 = vpop.f32.mrb[0].mxu0
    %v544 = vadd.f32 %v89, %v543
    %v545 = vpop.f32.mrb[0].mxu0
    %v546 = vadd.f32 %v93, %v545
    %v547 = vpop.f32.mrb[0].mxu0
    %v548 = vadd.f32 %v89, %v547
    %v549 = vpop.f32.mrb[0].mxu0
    %v550 = vadd.f32 %v93, %v549
    %551 = vmatprep.mubr.bf16.mxu0 %v388
    %552 = vmatmul.mubr.bf16.gmra.mrb[0].mxu0 %v216
    %v553 = vpop.f32.mrb[0].mxu0
    %v554 = vadd.f32 %v89, %v553
    %v555 = vpop.f32.mrb[0].mxu0
    %v556 = vadd.f32 %v93, %v555
    %v557 = vpop.f32.mrb[0].mxu0
    %v558 = vadd.f32 %v89, %v557
    %v559 = vpop.f32.mrb[0].mxu0
    %v560 = vadd.f32 %v93, %v559
    %561 = vmatprep.mubr.bf16.mxu0 %v391
    %562 = vmatmul.mubr.bf16.gmra.mrb[0].mxu0 %v218
    %v563 = vpop.f32.mrb[0].mxu0
    %v564 = vadd.f32 %v89, %v563
    %v565 = vpop.f32.mrb[0].mxu0
    %v566 = vadd.f32 %v93, %v565
    %v567 = vpop.f32.mrb[0].mxu0
    %v568 = vadd.f32 %v89, %v567
    %v569 = vpop.f32.mrb[0].mxu0
    %v570 = vadd.f32 %v93, %v569
    %571 = vmatprep.mubr.bf16.mxu0 %v394
    %572 = vmatmul.mubr.bf16.gmra.mrb[0].mxu0 %v220
    %v573 = vpop.f32.mrb[0].mxu0
    %v574 = vadd.f32 %v89, %v573
    %v575 = vpop.f32.mrb[0].mxu0
    %v576 = vadd.f32 %v93, %v575
    %v577 = vpop.f32.mrb[0].mxu0
    %v578 = vadd.f32 %v89, %v577
    %v579 = vpop.f32.mrb[0].mxu0
    %v580 = vadd.f32 %v93, %v579
    %581 = vmatprep.mubr.bf16.mxu0 %v397
    %582 = vmatmul.mubr.bf16.gmra.mrb[0].mxu0 %v222
    %v583 = vpop.f32.mrb[0].mxu0
    %v584 = vadd.f32 %v89, %v583
    %v585 = vpop.f32.mrb[0].mxu0
    %v586 = vadd.f32 %v93, %v585
    %v587 = vpop.f32.mrb[0].mxu0
    %v588 = vadd.f32 %v89, %v587
    %v589 = vpop.f32.mrb[0].mxu0
    %v590 = vadd.f32 %v93, %v589
    %591 = vdwg.mxu0
    %v592 = vmax.f32 %v434, 0.0
    %v593 = vmax.f32 %v436, 0.0
    %v594 = vmax.f32 %v438, 0.0
    %v595 = vmax.f32 %v440, 0.0
    %v596 = vmax.f32 %v444, 0.0
    %v597 = vmax.f32 %v446, 0.0
    %v598 = vmax.f32 %v448, 0.0
    %v599 = vmax.f32 %v450, 0.0
    %v600 = vmax.f32 %v454, 0.0
    %v601 = vmax.f32 %v456, 0.0
    %v602 = vmax.f32 %v458, 0.0
    %v603 = vmax.f32 %v460, 0.0
    %v604 = vmax.f32 %v464, 0.0
    %v605 = vmax.f32 %v466, 0.0
    %v606 = vmax.f32 %v468, 0.0
    %v607 = vmax.f32 %v470, 0.0
    %v608 = vmax.f32 %v474, 0.0
    %v609 = vmax.f32 %v476, 0.0
    %v610 = vmax.f32 %v478, 0.0
    %v611 = vmax.f32 %v480, 0.0
    %v612 = vmax.f32 %v484, 0.0
    %v613 = vmax.f32 %v486, 0.0
    %v614 = vmax.f32 %v488, 0.0
    %v615 = vmax.f32 %v490, 0.0
    %v616 = vmax.f32 %v494, 0.0
    %v617 = vmax.f32 %v496, 0.0
    %v618 = vmax.f32 %v498, 0.0
    %v619 = vmax.f32 %v500, 0.0
    %v620 = vmax.f32 %v504, 0.0
    %v621 = vmax.f32 %v506, 0.0
    %v622 = vmax.f32 %v508, 0.0
    %v623 = vmax.f32 %v510, 0.0
    %v624 = vmax.f32 %v514, 0.0
    %v625 = vmax.f32 %v516, 0.0
    %v626 = vmax.f32 %v518, 0.0
    %v627 = vmax.f32 %v520, 0.0
    %v628 = vmax.f32 %v524, 0.0
    %v629 = vmax.f32 %v526, 0.0
    %v630 = vmax.f32 %v528, 0.0
    %v631 = vmax.f32 %v530, 0.0
    %v632 = vmax.f32 %v534, 0.0
    %v633 = vmax.f32 %v536, 0.0
    %v634 = vmax.f32 %v538, 0.0
    %v635 = vmax.f32 %v540, 0.0
    %v636 = vmax.f32 %v544, 0.0
    %v637 = vmax.f32 %v546, 0.0
    %v638 = vmax.f32 %v548, 0.0
    %v639 = vmax.f32 %v550, 0.0
    %v640 = vmax.f32 %v554, 0.0
    %v641 = vmax.f32 %v556, 0.0
    %v642 = vmax.f32 %v558, 0.0
    %v643 = vmax.f32 %v560, 0.0
    %v644 = vmax.f32 %v564, 0.0
    %v645 = vmax.f32 %v566, 0.0
    %v646 = vmax.f32 %v568, 0.0
    %v647 = vmax.f32 %v570, 0.0
    %v648 = vmax.f32 %v574, 0.0
    %v649 = vmax.f32 %v576, 0.0
    %v650 = vmax.f32 %v578, 0.0
    %v651 = vmax.f32 %v580, 0.0
    %v652 = vmax.f32 %v584, 0.0
    %v653 = vmax.f32 %v586, 0.0
    %v654 = vmax.f32 %v588, 0.0
    %v655 = vmax.f32 %v590, 0.0
    %v656 = vpack.c.bf16 %v594, %v592
    %v657 = vpack.c.bf16 %v595, %v593
    %v658 = vpack.c.bf16 %v598, %v596
    %v659 = vpack.c.bf16 %v599, %v597
    %v660 = vpack.c.bf16 %v602, %v600
    %v661 = vpack.c.bf16 %v603, %v601
    %v662 = vpack.c.bf16 %v606, %v604
    %v663 = vpack.c.bf16 %v607, %v605
    %v664 = vpack.c.bf16 %v610, %v608
    %v665 = vpack.c.bf16 %v611, %v609
    %v666 = vpack.c.bf16 %v614, %v612
    %v667 = vpack.c.bf16 %v615, %v613
    %v668 = vpack.c.bf16 %v618, %v616
    %v669 = vpack.c.bf16 %v619, %v617
    %v670 = vpack.c.bf16 %v622, %v620
    %v671 = vpack.c.bf16 %v623, %v621
    %v672 = vpack.c.bf16 %v626, %v624
    %v673 = vpack.c.bf16 %v627, %v625
    %v674 = vpack.c.bf16 %v630, %v628
    %v675 = vpack.c.bf16 %v631, %v629
    %v676 = vpack.c.bf16 %v634, %v632
    %v677 = vpack.c.bf16 %v635, %v633
    %v678 = vpack.c.bf16 %v638, %v636
    %v679 = vpack.c.bf16 %v639, %v637
    %v680 = vpack.c.bf16 %v642, %v640
    %v681 = vpack.c.bf16 %v643, %v641
    %v682 = vpack.c.bf16 %v646, %v644
    %v683 = vpack.c.bf16 %v647, %v645
    %v684 = vpack.c.bf16 %v650, %v648
    %v685 = vpack.c.bf16 %v651, %v649
    %v686 = vpack.c.bf16 %v654, %v652
    %v687 = vpack.c.bf16 %v655, %v653
    %v688 = vld [vmem:[%s3] sm:$0xf]
    %v689 = vld [vmem:[%s3 + $0x4] sm:$0xf]
    %v690 = vld [vmem:[%s3 + $0x8] sm:$0xf]
    %v691 = vld [vmem:[%s3 + $0xc] sm:$0xf]
    %v692 = vld [vmem:[%s3 + $0x10] sm:$0xf]
    %v693 = vld [vmem:[%s3 + $0x14] sm:$0xf]
    %v694 = vld [vmem:[%s3 + $0x18] sm:$0xf]
    %v695 = vld [vmem:[%s3 + $0x1c] sm:$0xf]
    %v696 = vld [vmem:[%s3 + $0x20] sm:$0xf]
    %v697 = vld [vmem:[%s3 + $0x24] sm:$0xf]
    %v698 = vld [vmem:[%s3 + $0x28] sm:$0xf]
    %v699 = vld [vmem:[%s3 + $0x2c] sm:$0xf]
    %v700 = vld [vmem:[%s3 + $0x30] sm:$0xf]
    %v701 = vld [vmem:[%s3 + $0x34] sm:$0xf]
    %v702 = vld [vmem:[%s3 + $0x38] sm:$0xf]
    %v703 = vld [vmem:[%s3 + $0x3c] sm:$0xf]
    %v704 = vld [vmem:[%s3 + $0x40] sm:$0xf]
    %v705 = vld [vmem:[%s3 + $0x44] sm:$0xf]
    %v706 = vld [vmem:[%s3 + $0x48] sm:$0xf]
    %v707 = vld [vmem:[%s3 + $0x4c] sm:$0xf]
    %v708 = vld [vmem:[%s3 + $0x50] sm:$0xf]
    %v709 = vld [vmem:[%s3 + $0x54] sm:$0xf]
    %v710 = vld [vmem:[%s3 + $0x58] sm:$0xf]
    %v711 = vld [vmem:[%s3 + $0x5c] sm:$0xf]
    %v712 = vld [vmem:[%s3 + $0x60] sm:$0xf]
    %v713 = vld [vmem:[%s3 + $0x64] sm:$0xf]
    %v714 = vld [vmem:[%s3 + $0x68] sm:$0xf]
    %v715 = vld [vmem:[%s3 + $0x6c] sm:$0xf]
    %v716 = vld [vmem:[%s3 + $0x70] sm:$0xf]
    %v717 = vld [vmem:[%s3 + $0x74] sm:$0xf]
    %v718 = vld [vmem:[%s3 + $0x78] sm:$0xf]
    %v719 = vld [vmem:[%s3 + $0x7c] sm:$0xf]
    %v720 = vld [vmem:[%s4] sm:$0x1]
    %v722 = vlaneseq
    %v723 = vshrl.u32 %v722, 7
    %v724 = vsub.s32 0, %v723
    %v725 = vrot.slane %v720, %v724
    %v759 = vunpack.c.l.b16 %v688
    %v760 = vunpack.c.l.b16 %v689
    %v761 = vunpack.c.l.b16 %v690
    %v762 = vunpack.c.l.b16 %v691
    %v763 = vunpack.c.l.b16 %v692
    %v764 = vunpack.c.l.b16 %v693
    %v765 = vunpack.c.l.b16 %v694
    %v766 = vunpack.c.l.b16 %v695
    %v767 = vunpack.c.l.b16 %v696
    %v768 = vunpack.c.l.b16 %v697
    %v769 = vunpack.c.l.b16 %v698
    %v770 = vunpack.c.l.b16 %v699
    %v771 = vunpack.c.l.b16 %v700
    %v772 = vunpack.c.l.b16 %v701
    %v773 = vunpack.c.l.b16 %v702
    %v774 = vunpack.c.l.b16 %v703
    %v775 = vunpack.c.l.b16 %v704
    %v776 = vunpack.c.l.b16 %v705
    %v777 = vunpack.c.l.b16 %v706
    %v778 = vunpack.c.l.b16 %v707
    %v779 = vunpack.c.l.b16 %v708
    %v780 = vunpack.c.l.b16 %v709
    %v781 = vunpack.c.l.b16 %v710
    %v782 = vunpack.c.l.b16 %v711
    %v783 = vunpack.c.l.b16 %v712
    %v784 = vunpack.c.l.b16 %v713
    %v785 = vunpack.c.l.b16 %v714
    %v786 = vunpack.c.l.b16 %v715
    %v787 = vunpack.c.l.b16 %v716
    %v788 = vunpack.c.l.b16 %v717
    %v789 = vunpack.c.l.b16 %v718
    %v790 = vunpack.c.l.b16 %v719
    %v791 = vpack.c.b16 %v760, %v759
    %v792 = vpack.c.b16 %v762, %v761
    %v793 = vpack.c.b16 %v764, %v763
    %v794 = vpack.c.b16 %v766, %v765
    %v795 = vpack.c.b16 %v768, %v767
    %v796 = vpack.c.b16 %v770, %v769
    %v797 = vpack.c.b16 %v772, %v771
    %v798 = vpack.c.b16 %v774, %v773
    %v799 = vpack.c.b16 %v776, %v775
    %v800 = vpack.c.b16 %v778, %v777
    %v801 = vpack.c.b16 %v780, %v779
    %v802 = vpack.c.b16 %v782, %v781
    %v803 = vpack.c.b16 %v784, %v783
    %v804 = vpack.c.b16 %v786, %v785
    %v805 = vpack.c.b16 %v788, %v787
    %v806 = vpack.c.b16 %v790, %v789
    %823 = vmatprep.subr.bf16.mxu0 0
    %824 = vmatpush1.bf16.msra.mxu0 %v791
    %825 = vmatprep.subr.bf16.mxu0 0
    %826 = vmatpush1.bf16.msra.mxu0 %v792
    %827 = vmatprep.subr.bf16.mxu0 0
    %828 = vmatpush1.bf16.msra.mxu0 %v793
    %829 = vmatprep.subr.bf16.mxu0 0
    %830 = vmatpush1.bf16.msra.mxu0 %v794
    %831 = vmatprep.subr.bf16.mxu0 0
    %832 = vmatpush1.bf16.msra.mxu0 %v795
    %833 = vmatprep.subr.bf16.mxu0 0
    %834 = vmatpush1.bf16.msra.mxu0 %v796
    %835 = vmatprep.subr.bf16.mxu0 0
    %836 = vmatpush1.bf16.msra.mxu0 %v797
    %837 = vmatprep.subr.bf16.mxu0 0
    %838 = vmatpush1.bf16.msra.mxu0 %v798
    %839 = vmatprep.subr.bf16.mxu0 0
    %840 = vmatpush1.bf16.msra.mxu0 %v799
    %841 = vmatprep.subr.bf16.mxu0 0
    %842 = vmatpush1.bf16.msra.mxu0 %v800
    %843 = vmatprep.subr.bf16.mxu0 0
    %844 = vmatpush1.bf16.msra.mxu0 %v801
    %845 = vmatprep.subr.bf16.mxu0 0
    %846 = vmatpush1.bf16.msra.mxu0 %v802
    %847 = vmatprep.subr.bf16.mxu0 0
    %848 = vmatpush1.bf16.msra.mxu0 %v803
    %849 = vmatprep.subr.bf16.mxu0 0
    %850 = vmatpush1.bf16.msra.mxu0 %v804
    %851 = vmatprep.subr.bf16.mxu0 0
    %852 = vmatpush1.bf16.msra.mxu0 %v805
    %853 = vmatprep.subr.bf16.mxu0 0
    %854 = vmatpush1.bf16.msra.mxu0 %v806
    %855 = vmatprep.mubr.bf16.mxu0 %v657
    %856 = vmatmul.mubr.bf16.gmra.mrb[0].mxu0 %v656
    %v857 = vpop.f32.mrb[0].mxu0
    %v858 = vadd.f32 %v725, %v857
    %v859 = vpop.f32.mrb[0].mxu0
    %v860 = vpop.f32.mrb[0].mxu0
    %v861 = vadd.f32 %v725, %v860
    %v862 = vpop.f32.mrb[0].mxu0
    %863 = vmatprep.mubr.bf16.mxu0 %v659
    %864 = vmatmul.mubr.bf16.gmra.mrb[0].mxu0 %v658
    %v865 = vpop.f32.mrb[0].mxu0
    %v866 = vadd.f32 %v725, %v865
    %v867 = vpop.f32.mrb[0].mxu0
    %v868 = vpop.f32.mrb[0].mxu0
    %v869 = vadd.f32 %v725, %v868
    %v870 = vpop.f32.mrb[0].mxu0
    %871 = vmatprep.mubr.bf16.mxu0 %v661
    %872 = vmatmul.mubr.bf16.gmra.mrb[0].mxu0 %v660
    %v873 = vpop.f32.mrb[0].mxu0
    %v874 = vadd.f32 %v725, %v873
    %v875 = vpop.f32.mrb[0].mxu0
    %v876 = vpop.f32.mrb[0].mxu0
    %v877 = vadd.f32 %v725, %v876
    %v878 = vpop.f32.mrb[0].mxu0
    %879 = vmatprep.mubr.bf16.mxu0 %v663
    %880 = vmatmul.mubr.bf16.gmra.mrb[0].mxu0 %v662
    %v881 = vpop.f32.mrb[0].mxu0
    %v882 = vadd.f32 %v725, %v881
    %v883 = vpop.f32.mrb[0].mxu0
    %v884 = vpop.f32.mrb[0].mxu0
    %v885 = vadd.f32 %v725, %v884
    %v886 = vpop.f32.mrb[0].mxu0
    %887 = vmatprep.mubr.bf16.mxu0 %v665
    %888 = vmatmul.mubr.bf16.gmra.mrb[0].mxu0 %v664
    %v889 = vpop.f32.mrb[0].mxu0
    %v890 = vadd.f32 %v725, %v889
    %v891 = vpop.f32.mrb[0].mxu0
    %v892 = vpop.f32.mrb[0].mxu0
    %v893 = vadd.f32 %v725, %v892
    %v894 = vpop.f32.mrb[0].mxu0
    %895 = vmatprep.mubr.bf16.mxu0 %v667
    %896 = vmatmul.mubr.bf16.gmra.mrb[0].mxu0 %v666
    %v897 = vpop.f32.mrb[0].mxu0
    %v898 = vadd.f32 %v725, %v897
    %v899 = vpop.f32.mrb[0].mxu0
    %v900 = vpop.f32.mrb[0].mxu0
    %v901 = vadd.f32 %v725, %v900
    %v902 = vpop.f32.mrb[0].mxu0
    %903 = vmatprep.mubr.bf16.mxu0 %v669
    %904 = vmatmul.mubr.bf16.gmra.mrb[0].mxu0 %v668
    %v905 = vpop.f32.mrb[0].mxu0
    %v906 = vadd.f32 %v725, %v905
    %v907 = vpop.f32.mrb[0].mxu0
    %v908 = vpop.f32.mrb[0].mxu0
    %v909 = vadd.f32 %v725, %v908
    %v910 = vpop.f32.mrb[0].mxu0
    %911 = vmatprep.mubr.bf16.mxu0 %v671
    %912 = vmatmul.mubr.bf16.gmra.mrb[0].mxu0 %v670
    %v913 = vpop.f32.mrb[0].mxu0
    %v914 = vadd.f32 %v725, %v913
    %v915 = vpop.f32.mrb[0].mxu0
    %v916 = vpop.f32.mrb[0].mxu0
    %v917 = vadd.f32 %v725, %v916
    %v918 = vpop.f32.mrb[0].mxu0
    %919 = vmatprep.mubr.bf16.mxu0 %v673
    %920 = vmatmul.mubr.bf16.gmra.mrb[0].mxu0 %v672
    %v921 = vpop.f32.mrb[0].mxu0
    %v922 = vadd.f32 %v725, %v921
    %v923 = vpop.f32.mrb[0].mxu0
    %v924 = vpop.f32.mrb[0].mxu0
    %v925 = vadd.f32 %v725, %v924
    %v926 = vpop.f32.mrb[0].mxu0
    %927 = vmatprep.mubr.bf16.mxu0 %v675
    %928 = vmatmul.mubr.bf16.gmra.mrb[0].mxu0 %v674
    %v929 = vpop.f32.mrb[0].mxu0
    %v930 = vadd.f32 %v725, %v929
    %v931 = vpop.f32.mrb[0].mxu0
    %v932 = vpop.f32.mrb[0].mxu0
    %v933 = vadd.f32 %v725, %v932
    %v934 = vpop.f32.mrb[0].mxu0
    %935 = vmatprep.mubr.bf16.mxu0 %v677
    %936 = vmatmul.mubr.bf16.gmra.mrb[0].mxu0 %v676
    %v937 = vpop.f32.mrb[0].mxu0
    %v938 = vadd.f32 %v725, %v937
    %v939 = vpop.f32.mrb[0].mxu0
    %v940 = vpop.f32.mrb[0].mxu0
    %v941 = vadd.f32 %v725, %v940
    %v942 = vpop.f32.mrb[0].mxu0
    %943 = vmatprep.mubr.bf16.mxu0 %v679
    %944 = vmatmul.mubr.bf16.gmra.mrb[0].mxu0 %v678
    %v945 = vpop.f32.mrb[0].mxu0
    %v946 = vadd.f32 %v725, %v945
    %v947 = vpop.f32.mrb[0].mxu0
    %v948 = vpop.f32.mrb[0].mxu0
    %v949 = vadd.f32 %v725, %v948
    %v950 = vpop.f32.mrb[0].mxu0
    %951 = vmatprep.mubr.bf16.mxu0 %v681
    %952 = vmatmul.mubr.bf16.gmra.mrb[0].mxu0 %v680
    %v953 = vpop.f32.mrb[0].mxu0
    %v954 = vadd.f32 %v725, %v953
    %v955 = vpop.f32.mrb[0].mxu0
    %v956 = vpop.f32.mrb[0].mxu0
    %v957 = vadd.f32 %v725, %v956
    %v958 = vpop.f32.mrb[0].mxu0
    %959 = vmatprep.mubr.bf16.mxu0 %v683
    %960 = vmatmul.mubr.bf16.gmra.mrb[0].mxu0 %v682
    %v961 = vpop.f32.mrb[0].mxu0
    %v962 = vadd.f32 %v725, %v961
    %v963 = vpop.f32.mrb[0].mxu0
    %v964 = vpop.f32.mrb[0].mxu0
    %v965 = vadd.f32 %v725, %v964
    %v966 = vpop.f32.mrb[0].mxu0
    %967 = vmatprep.mubr.bf16.mxu0 %v685
    %968 = vmatmul.mubr.bf16.gmra.mrb[0].mxu0 %v684
    %v969 = vpop.f32.mrb[0].mxu0
    %v970 = vadd.f32 %v725, %v969
    %v971 = vpop.f32.mrb[0].mxu0
    %v972 = vpop.f32.mrb[0].mxu0
    %v973 = vadd.f32 %v725, %v972
    %v974 = vpop.f32.mrb[0].mxu0
    %975 = vmatprep.mubr.bf16.mxu0 %v687
    %976 = vmatmul.mubr.bf16.gmra.mrb[0].mxu0 %v686
    %v977 = vpop.f32.mrb[0].mxu0
    %v978 = vadd.f32 %v725, %v977
    %v979 = vpop.f32.mrb[0].mxu0
    %v980 = vpop.f32.mrb[0].mxu0
    %v981 = vadd.f32 %v725, %v980
    %v982 = vpop.f32.mrb[0].mxu0
    %983 = vdwg.mxu0
    %v984 = vld [vmem:[%s5] sm:$0x1]
    %v986 = vlaneseq
    %v987 = vshrl.u32 %v986, 7
    %v988 = vsub.s32 0, %v987
    %v989 = vrot.slane %v984, %v988
    %v991 = vmul.f32 %v858, %v989
    %v992 = vmul.f32 %v861, %v989
    %v993 = vmul.f32 %v866, %v989
    %v994 = vmul.f32 %v869, %v989
    %v995 = vmul.f32 %v874, %v989
    %v996 = vmul.f32 %v877, %v989
    %v997 = vmul.f32 %v882, %v989
    %v998 = vmul.f32 %v885, %v989
    %v999 = vmul.f32 %v890, %v989
    %v1000 = vmul.f32 %v893, %v989
    %v1001 = vmul.f32 %v898, %v989
    %v1002 = vmul.f32 %v901, %v989
    %v1003 = vmul.f32 %v906, %v989
    %v1004 = vmul.f32 %v909, %v989
    %v1005 = vmul.f32 %v914, %v989
    %v1006 = vmul.f32 %v917, %v989
    %v1007 = vmul.f32 %v922, %v989
    %v1008 = vmul.f32 %v925, %v989
    %v1009 = vmul.f32 %v930, %v989
    %v1010 = vmul.f32 %v933, %v989
    %v1011 = vmul.f32 %v938, %v989
    %v1012 = vmul.f32 %v941, %v989
    %v1013 = vmul.f32 %v946, %v989
    %v1014 = vmul.f32 %v949, %v989
    %v1015 = vmul.f32 %v954, %v989
    %v1016 = vmul.f32 %v957, %v989
    %v1017 = vmul.f32 %v962, %v989
    %v1018 = vmul.f32 %v965, %v989
    %v1019 = vmul.f32 %v970, %v989
    %v1020 = vmul.f32 %v973, %v989
    %v1021 = vmul.f32 %v978, %v989
    %v1022 = vmul.f32 %v981, %v989
    %1023 = vadd.xlane.f32.xlu0 %v991
    %v1024 = vpop.xlane.xlu0 %1023
    %1025 = vadd.xlane.f32.xlu0 %v992
    %v1026 = vpop.xlane.xlu0 %1025
    %1027 = vadd.xlane.f32.xlu0 %v993
    %v1028 = vpop.xlane.xlu0 %1027
    %1029 = vadd.xlane.f32.xlu0 %v994
    %v1030 = vpop.xlane.xlu0 %1029
    %1031 = vadd.xlane.f32.xlu0 %v995
    %v1032 = vpop.xlane.xlu0 %1031
    %1033 = vadd.xlane.f32.xlu0 %v996
    %v1034 = vpop.xlane.xlu0 %1033
    %1035 = vadd.xlane.f32.xlu0 %v997
    %v1036 = vpop.xlane.xlu0 %1035
    %1037 = vadd.xlane.f32.xlu0 %v998
    %v1038 = vpop.xlane.xlu0 %1037
    %1039 = vadd.xlane.f32.xlu0 %v999
    %v1040 = vpop.xlane.xlu0 %1039
    %1041 = vadd.xlane.f32.xlu0 %v1000
    %v1042 = vpop.xlane.xlu0 %1041
    %1043 = vadd.xlane.f32.xlu0 %v1001
    %v1044 = vpop.xlane.xlu0 %1043
    %1045 = vadd.xlane.f32.xlu0 %v1002
    %v1046 = vpop.xlane.xlu0 %1045
    %1047 = vadd.xlane.f32.xlu0 %v1003
    %v1048 = vpop.xlane.xlu0 %1047
    %1049 = vadd.xlane.f32.xlu0 %v1004
    %v1050 = vpop.xlane.xlu0 %1049
    %1051 = vadd.xlane.f32.xlu0 %v1005
    %v1052 = vpop.xlane.xlu0 %1051
    %1053 = vadd.xlane.f32.xlu0 %v1006
    %v1054 = vpop.xlane.xlu0 %1053
    %1055 = vadd.xlane.f32.xlu0 %v1007
    %v1056 = vpop.xlane.xlu0 %1055
    %1057 = vadd.xlane.f32.xlu0 %v1008
    %v1058 = vpop.xlane.xlu0 %1057
    %1059 = vadd.xlane.f32.xlu0 %v1009
    %v1060 = vpop.xlane.xlu0 %1059
    %1061 = vadd.xlane.f32.xlu0 %v1010
    %v1062 = vpop.xlane.xlu0 %1061
    %1063 = vadd.xlane.f32.xlu0 %v1011
    %v1064 = vpop.xlane.xlu0 %1063
    %1065 = vadd.xlane.f32.xlu0 %v1012
    %v1066 = vpop.xlane.xlu0 %1065
    %1067 = vadd.xlane.f32.xlu0 %v1013
    %v1068 = vpop.xlane.xlu0 %1067
    %1069 = vadd.xlane.f32.xlu0 %v1014
    %v1070 = vpop.xlane.xlu0 %1069
    %1071 = vadd.xlane.f32.xlu0 %v1015
    %v1072 = vpop.xlane.xlu0 %1071
    %1073 = vadd.xlane.f32.xlu0 %v1016
    %v1074 = vpop.xlane.xlu0 %1073
    %1075 = vadd.xlane.f32.xlu0 %v1017
    %v1076 = vpop.xlane.xlu0 %1075
    %1077 = vadd.xlane.f32.xlu0 %v1018
    %v1078 = vpop.xlane.xlu0 %1077
    %1079 = vadd.xlane.f32.xlu0 %v1019
    %v1080 = vpop.xlane.xlu0 %1079
    %1081 = vadd.xlane.f32.xlu0 %v1020
    %v1082 = vpop.xlane.xlu0 %1081
    %1083 = vadd.xlane.f32.xlu0 %v1021
    %v1084 = vpop.xlane.xlu0 %1083
    %1085 = vadd.xlane.f32.xlu0 %v1022
    %v1086 = vpop.xlane.xlu0 %1085
    %v1087 = vld [vmem:[#allocation2] sm:$0x1]
    %v1089 = vlaneseq
    %v1090 = vshrl.u32 %v1089, 7
    %v1091 = vsub.s32 0, %v1090
    %v1092 = vrot.slane %v1087, %v1091
    %v1094 = vadd.f32 %v1024, %v1092
    %v1095 = vadd.f32 %v1026, %v1092
    %v1096 = vadd.f32 %v1028, %v1092
    %v1097 = vadd.f32 %v1030, %v1092
    %v1098 = vadd.f32 %v1032, %v1092
    %v1099 = vadd.f32 %v1034, %v1092
    %v1100 = vadd.f32 %v1036, %v1092
    %v1101 = vadd.f32 %v1038, %v1092
    %v1102 = vadd.f32 %v1040, %v1092
    %v1103 = vadd.f32 %v1042, %v1092
    %v1104 = vadd.f32 %v1044, %v1092
    %v1105 = vadd.f32 %v1046, %v1092
    %v1106 = vadd.f32 %v1048, %v1092
    %v1107 = vadd.f32 %v1050, %v1092
    %v1108 = vadd.f32 %v1052, %v1092
    %v1109 = vadd.f32 %v1054, %v1092
    %v1110 = vadd.f32 %v1056, %v1092
    %v1111 = vadd.f32 %v1058, %v1092
    %v1112 = vadd.f32 %v1060, %v1092
    %v1113 = vadd.f32 %v1062, %v1092
    %v1114 = vadd.f32 %v1064, %v1092
    %v1115 = vadd.f32 %v1066, %v1092
    %v1116 = vadd.f32 %v1068, %v1092
    %v1117 = vadd.f32 %v1070, %v1092
    %v1118 = vadd.f32 %v1072, %v1092
    %v1119 = vadd.f32 %v1074, %v1092
    %v1120 = vadd.f32 %v1076, %v1092
    %v1121 = vadd.f32 %v1078, %v1092
    %v1122 = vadd.f32 %v1080, %v1092
    %v1123 = vadd.f32 %v1082, %v1092
    %v1124 = vadd.f32 %v1084, %v1092
    %v1125 = vadd.f32 %v1086, %v1092
    %v1126 = vxor.u32 %v1094, 2147483648
    %v1127 = vxor.u32 %v1095, 2147483648
    %v1128 = vxor.u32 %v1096, 2147483648
    %v1129 = vxor.u32 %v1097, 2147483648
    %v1130 = vxor.u32 %v1098, 2147483648
    %v1131 = vxor.u32 %v1099, 2147483648
    %v1132 = vxor.u32 %v1100, 2147483648
    %v1133 = vxor.u32 %v1101, 2147483648
    %v1134 = vxor.u32 %v1102, 2147483648
    %v1135 = vxor.u32 %v1103, 2147483648
    %v1136 = vxor.u32 %v1104, 2147483648
    %v1137 = vxor.u32 %v1105, 2147483648
    %v1138 = vxor.u32 %v1106, 2147483648
    %v1139 = vxor.u32 %v1107, 2147483648
    %v1140 = vxor.u32 %v1108, 2147483648
    %v1141 = vxor.u32 %v1109, 2147483648
    %v1142 = vxor.u32 %v1110, 2147483648
    %v1143 = vxor.u32 %v1111, 2147483648
    %v1144 = vxor.u32 %v1112, 2147483648
    %v1145 = vxor.u32 %v1113, 2147483648
    %v1146 = vxor.u32 %v1114, 2147483648
    %v1147 = vxor.u32 %v1115, 2147483648
    %v1148 = vxor.u32 %v1116, 2147483648
    %v1149 = vxor.u32 %v1117, 2147483648
    %v1150 = vxor.u32 %v1118, 2147483648
    %v1151 = vxor.u32 %v1119, 2147483648
    %v1152 = vxor.u32 %v1120, 2147483648
    %v1153 = vxor.u32 %v1121, 2147483648
    %v1154 = vxor.u32 %v1122, 2147483648
    %v1155 = vxor.u32 %v1123, 2147483648
    %v1156 = vxor.u32 %v1124, 2147483648
    %v1157 = vxor.u32 %v1125, 2147483648
    %v1158 = vmul.f32 %v1126, 1.442695
    %v1159 = vpow.pop %v1158
    %v1160 = vmul.f32 %v1127, 1.442695
    %v1161 = vpow.pop %v1160
    %v1162 = vmul.f32 %v1128, 1.442695
    %v1163 = vpow.pop %v1162
    %v1164 = vmul.f32 %v1129, 1.442695
    %v1165 = vpow.pop %v1164
    %v1166 = vmul.f32 %v1130, 1.442695
    %v1167 = vpow.pop %v1166
    %v1168 = vmul.f32 %v1131, 1.442695
    %v1169 = vpow.pop %v1168
    %v1170 = vmul.f32 %v1132, 1.442695
    %v1171 = vpow.pop %v1170
    %v1172 = vmul.f32 %v1133, 1.442695
    %v1173 = vpow.pop %v1172
    %v1174 = vmul.f32 %v1134, 1.442695
    %v1175 = vpow.pop %v1174
    %v1176 = vmul.f32 %v1135, 1.442695
    %v1177 = vpow.pop %v1176
    %v1178 = vmul.f32 %v1136, 1.442695
    %v1179 = vpow.pop %v1178
    %v1180 = vmul.f32 %v1137, 1.442695
    %v1181 = vpow.pop %v1180
    %v1182 = vmul.f32 %v1138, 1.442695
    %v1183 = vpow.pop %v1182
    %v1184 = vmul.f32 %v1139, 1.442695
    %v1185 = vpow.pop %v1184
    %v1186 = vmul.f32 %v1140, 1.442695
    %v1187 = vpow.pop %v1186
    %v1188 = vmul.f32 %v1141, 1.442695
    %v1189 = vpow.pop %v1188
    %v1190 = vmul.f32 %v1142, 1.442695
    %v1191 = vpow.pop %v1190
    %v1192 = vmul.f32 %v1143, 1.442695
    %v1193 = vpow.pop %v1192
    %v1194 = vmul.f32 %v1144, 1.442695
    %v1195 = vpow.pop %v1194
    %v1196 = vmul.f32 %v1145, 1.442695
    %v1197 = vpow.pop %v1196
    %v1198 = vmul.f32 %v1146, 1.442695
    %v1199 = vpow.pop %v1198
    %v1200 = vmul.f32 %v1147, 1.442695
    %v1201 = vpow.pop %v1200
    %v1202 = vmul.f32 %v1148, 1.442695
    %v1203 = vpow.pop %v1202
    %v1204 = vmul.f32 %v1149, 1.442695
    %v1205 = vpow.pop %v1204
    %v1206 = vmul.f32 %v1150, 1.442695
    %v1207 = vpow.pop %v1206
    %v1208 = vmul.f32 %v1151, 1.442695
    %v1209 = vpow.pop %v1208
    %v1210 = vmul.f32 %v1152, 1.442695
    %v1211 = vpow.pop %v1210
    %v1212 = vmul.f32 %v1153, 1.442695
    %v1213 = vpow.pop %v1212
    %v1214 = vmul.f32 %v1154, 1.442695
    %v1215 = vpow.pop %v1214
    %v1216 = vmul.f32 %v1155, 1.442695
    %v1217 = vpow.pop %v1216
    %v1218 = vmul.f32 %v1156, 1.442695
    %v1219 = vpow.pop %v1218
    %v1220 = vmul.f32 %v1157, 1.442695
    %v1221 = vpow.pop %v1220
    %v1222 = vadd.f32 %v1159, 1.0
    %v1223 = vadd.f32 %v1161, 1.0
    %v1224 = vadd.f32 %v1163, 1.0
    %v1225 = vadd.f32 %v1165, 1.0
    %v1226 = vadd.f32 %v1167, 1.0
    %v1227 = vadd.f32 %v1169, 1.0
    %v1228 = vadd.f32 %v1171, 1.0
    %v1229 = vadd.f32 %v1173, 1.0
    %v1230 = vadd.f32 %v1175, 1.0
    %v1231 = vadd.f32 %v1177, 1.0
    %v1232 = vadd.f32 %v1179, 1.0
    %v1233 = vadd.f32 %v1181, 1.0
    %v1234 = vadd.f32 %v1183, 1.0
    %v1235 = vadd.f32 %v1185, 1.0
    %v1236 = vadd.f32 %v1187, 1.0
    %v1237 = vadd.f32 %v1189, 1.0
    %v1238 = vadd.f32 %v1191, 1.0
    %v1239 = vadd.f32 %v1193, 1.0
    %v1240 = vadd.f32 %v1195, 1.0
    %v1241 = vadd.f32 %v1197, 1.0
    %v1242 = vadd.f32 %v1199, 1.0
    %v1243 = vadd.f32 %v1201, 1.0
    %v1244 = vadd.f32 %v1203, 1.0
    %v1245 = vadd.f32 %v1205, 1.0
    %v1246 = vadd.f32 %v1207, 1.0
    %v1247 = vadd.f32 %v1209, 1.0
    %v1248 = vadd.f32 %v1211, 1.0
    %v1249 = vadd.f32 %v1213, 1.0
    %v1250 = vadd.f32 %v1215, 1.0
    %v1251 = vadd.f32 %v1217, 1.0
    %v1252 = vadd.f32 %v1219, 1.0
    %v1253 = vadd.f32 %v1221, 1.0
    %v1254 = vrcp.pop %v1222
    %v1255 = vmul.f32 1.0, %v1254
    %v1256 = vrcp.pop %v1223
    %v1257 = vmul.f32 1.0, %v1256
    %v1258 = vrcp.pop %v1224
    %v1259 = vmul.f32 1.0, %v1258
    %v1260 = vrcp.pop %v1225
    %v1261 = vmul.f32 1.0, %v1260
    %v1262 = vrcp.pop %v1226
    %v1263 = vmul.f32 1.0, %v1262
    %v1264 = vrcp.pop %v1227
    %v1265 = vmul.f32 1.0, %v1264
    %v1266 = vrcp.pop %v1228
    %v1267 = vmul.f32 1.0, %v1266
    %v1268 = vrcp.pop %v1229
    %v1269 = vmul.f32 1.0, %v1268
    %v1270 = vrcp.pop %v1230
    %v1271 = vmul.f32 1.0, %v1270
    %v1272 = vrcp.pop %v1231
    %v1273 = vmul.f32 1.0, %v1272
    %v1274 = vrcp.pop %v1232
    %v1275 = vmul.f32 1.0, %v1274
    %v1276 = vrcp.pop %v1233
    %v1277 = vmul.f32 1.0, %v1276
    %v1278 = vrcp.pop %v1234
    %v1279 = vmul.f32 1.0, %v1278
    %v1280 = vrcp.pop %v1235
    %v1281 = vmul.f32 1.0, %v1280
    %v1282 = vrcp.pop %v1236
    %v1283 = vmul.f32 1.0, %v1282
    %v1284 = vrcp.pop %v1237
    %v1285 = vmul.f32 1.0, %v1284
    %v1286 = vrcp.pop %v1238
    %v1287 = vmul.f32 1.0, %v1286
    %v1288 = vrcp.pop %v1239
    %v1289 = vmul.f32 1.0, %v1288
    %v1290 = vrcp.pop %v1240
    %v1291 = vmul.f32 1.0, %v1290
    %v1292 = vrcp.pop %v1241
    %v1293 = vmul.f32 1.0, %v1292
    %v1294 = vrcp.pop %v1242
    %v1295 = vmul.f32 1.0, %v1294
    %v1296 = vrcp.pop %v1243
    %v1297 = vmul.f32 1.0, %v1296
    %v1298 = vrcp.pop %v1244
    %v1299 = vmul.f32 1.0, %v1298
    %v1300 = vrcp.pop %v1245
    %v1301 = vmul.f32 1.0, %v1300
    %v1302 = vrcp.pop %v1246
    %v1303 = vmul.f32 1.0, %v1302
    %v1304 = vrcp.pop %v1247
    %v1305 = vmul.f32 1.0, %v1304
    %v1306 = vrcp.pop %v1248
    %v1307 = vmul.f32 1.0, %v1306
    %v1308 = vrcp.pop %v1249
    %v1309 = vmul.f32 1.0, %v1308
    %v1310 = vrcp.pop %v1250
    %v1311 = vmul.f32 1.0, %v1310
    %v1312 = vrcp.pop %v1251
    %v1313 = vmul.f32 1.0, %v1312
    %v1314 = vrcp.pop %v1252
    %v1315 = vmul.f32 1.0, %v1314
    %v1316 = vrcp.pop %v1253
    %v1317 = vmul.f32 1.0, %v1316
    %v1318 = vlaneseq
    %v1319 = vand.u32 %v1318, 127
    %vm1320 = vcmp.eq.s32.totalorder %v1319, 2
    %1322 = vset.pattern.permute.xlu0 0
    %1323 = vperm.xlu0 %1322, %v1255
    %v1324 = vpop.permute.xlu0 %1323
    %1327 = vset.pattern.permute.xlu0 0
    %1328 = vperm.xlu0 %1327, %v1257
    %v1329 = vpop.permute.xlu0 %1328
    %1332 = vset.pattern.permute.xlu0 0
    %1333 = vperm.xlu0 %1332, %v1259
    %v1334 = vpop.permute.xlu0 %1333
    %1337 = vset.pattern.permute.xlu0 0
    %1338 = vperm.xlu0 %1337, %v1261
    %v1339 = vpop.permute.xlu0 %1338
    %1342 = vset.pattern.permute.xlu0 0
    %1343 = vperm.xlu0 %1342, %v1263
    %v1344 = vpop.permute.xlu0 %1343
    %1347 = vset.pattern.permute.xlu0 0
    %1348 = vperm.xlu0 %1347, %v1265
    %v1349 = vpop.permute.xlu0 %1348
    %1352 = vset.pattern.permute.xlu0 0
    %1353 = vperm.xlu0 %1352, %v1267
    %v1354 = vpop.permute.xlu0 %1353
    %1357 = vset.pattern.permute.xlu0 0
    %1358 = vperm.xlu0 %1357, %v1269
    %v1359 = vpop.permute.xlu0 %1358
    %1362 = vset.pattern.permute.xlu0 0
    %1363 = vperm.xlu0 %1362, %v1271
    %v1364 = vpop.permute.xlu0 %1363
    %1367 = vset.pattern.permute.xlu0 0
    %1368 = vperm.xlu0 %1367, %v1273
    %v1369 = vpop.permute.xlu0 %1368
    %1372 = vset.pattern.permute.xlu0 0
    %1373 = vperm.xlu0 %1372, %v1275
    %v1374 = vpop.permute.xlu0 %1373
    %1377 = vset.pattern.permute.xlu0 0
    %1378 = vperm.xlu0 %1377, %v1277
    %v1379 = vpop.permute.xlu0 %1378
    %1382 = vset.pattern.permute.xlu0 0
    %1383 = vperm.xlu0 %1382, %v1279
    %v1384 = vpop.permute.xlu0 %1383
    %1387 = vset.pattern.permute.xlu0 0
    %1388 = vperm.xlu0 %1387, %v1281
    %v1389 = vpop.permute.xlu0 %1388
    %1392 = vset.pattern.permute.xlu0 0
    %1393 = vperm.xlu0 %1392, %v1283
    %v1394 = vpop.permute.xlu0 %1393
    %1397 = vset.pattern.permute.xlu0 0
    %1398 = vperm.xlu0 %1397, %v1285
    %v1399 = vpop.permute.xlu0 %1398
    %1402 = vset.pattern.permute.xlu0 0
    %1403 = vperm.xlu0 %1402, %v1287
    %v1404 = vpop.permute.xlu0 %1403
    %1407 = vset.pattern.permute.xlu0 0
    %1408 = vperm.xlu0 %1407, %v1289
    %v1409 = vpop.permute.xlu0 %1408
    %1412 = vset.pattern.permute.xlu0 0
    %1413 = vperm.xlu0 %1412, %v1291
    %v1414 = vpop.permute.xlu0 %1413
    %1417 = vset.pattern.permute.xlu0 0
    %1418 = vperm.xlu0 %1417, %v1293
    %v1419 = vpop.permute.xlu0 %1418
    %1422 = vset.pattern.permute.xlu0 0
    %1423 = vperm.xlu0 %1422, %v1295
    %v1424 = vpop.permute.xlu0 %1423
    %1427 = vset.pattern.permute.xlu0 0
    %1428 = vperm.xlu0 %1427, %v1297
    %v1429 = vpop.permute.xlu0 %1428
    %1432 = vset.pattern.permute.xlu0 0
    %1433 = vperm.xlu0 %1432, %v1299
    %v1434 = vpop.permute.xlu0 %1433
    %1437 = vset.pattern.permute.xlu0 0
    %1438 = vperm.xlu0 %1437, %v1301
    %v1439 = vpop.permute.xlu0 %1438
    %1442 = vset.pattern.permute.xlu0 0
    %1443 = vperm.xlu0 %1442, %v1303
    %v1444 = vpop.permute.xlu0 %1443
    %1447 = vset.pattern.permute.xlu0 0
    %1448 = vperm.xlu0 %1447, %v1305
    %v1449 = vpop.permute.xlu0 %1448
    %1452 = vset.pattern.permute.xlu0 0
    %1453 = vperm.xlu0 %1452, %v1307
    %v1454 = vpop.permute.xlu0 %1453
    %1457 = vset.pattern.permute.xlu0 0
    %1458 = vperm.xlu0 %1457, %v1309
    %v1459 = vpop.permute.xlu0 %1458
    %1462 = vset.pattern.permute.xlu0 0
    %1463 = vperm.xlu0 %1462, %v1311
    %v1464 = vpop.permute.xlu0 %1463
    %1467 = vset.pattern.permute.xlu0 0
    %1468 = vperm.xlu0 %1467, %v1313
    %v1469 = vpop.permute.xlu0 %1468
    %1472 = vset.pattern.permute.xlu0 0
    %1473 = vperm.xlu0 %1472, %v1315
    %v1474 = vpop.permute.xlu0 %1473
    %1477 = vset.pattern.permute.xlu0 0
    %1478 = vperm.xlu0 %1477, %v1317
    %v1479 = vpop.permute.xlu0 %1478
    %v1481 = vsel %vm1320, %v1324, %v858
    %v1482 = vsel %vm1320, %v1329, %v861
    %v1483 = vsel %vm1320, %v1334, %v866
    %v1484 = vsel %vm1320, %v1339, %v869
    %v1485 = vsel %vm1320, %v1344, %v874
    %v1486 = vsel %vm1320, %v1349, %v877
    %v1487 = vsel %vm1320, %v1354, %v882
    %v1488 = vsel %vm1320, %v1359, %v885
    %v1489 = vsel %vm1320, %v1364, %v890
    %v1490 = vsel %vm1320, %v1369, %v893
    %v1491 = vsel %vm1320, %v1374, %v898
    %v1492 = vsel %vm1320, %v1379, %v901
    %v1493 = vsel %vm1320, %v1384, %v906
    %v1494 = vsel %vm1320, %v1389, %v909
    %v1495 = vsel %vm1320, %v1394, %v914
    %v1496 = vsel %vm1320, %v1399, %v917
    %v1497 = vsel %vm1320, %v1404, %v922
    %v1498 = vsel %vm1320, %v1409, %v925
    %v1499 = vsel %vm1320, %v1414, %v930
    %v1500 = vsel %vm1320, %v1419, %v933
    %v1501 = vsel %vm1320, %v1424, %v938
    %v1502 = vsel %vm1320, %v1429, %v941
    %v1503 = vsel %vm1320, %v1434, %v946
    %v1504 = vsel %vm1320, %v1439, %v949
    %v1505 = vsel %vm1320, %v1444, %v954
    %v1506 = vsel %vm1320, %v1449, %v957
    %v1507 = vsel %vm1320, %v1454, %v962
    %v1508 = vsel %vm1320, %v1459, %v965
    %v1509 = vsel %vm1320, %v1464, %v970
    %v1510 = vsel %vm1320, %v1469, %v973
    %v1511 = vsel %vm1320, %v1474, %v978
    %v1512 = vsel %vm1320, %v1479, %v981
    %1513 = vst [vmem:[#allocation3] sm:$0xff] %v1481
    %1514 = vst [vmem:[#allocation3 + $0x8] sm:$0xff] %v1482
    %1515 = vst [vmem:[#allocation3 + $0x10] sm:$0xff] %v1483
    %1516 = vst [vmem:[#allocation3 + $0x18] sm:$0xff] %v1484
    %1517 = vst [vmem:[#allocation3 + $0x20] sm:$0xff] %v1485
    %1518 = vst [vmem:[#allocation3 + $0x28] sm:$0xff] %v1486
    %1519 = vst [vmem:[#allocation3 + $0x30] sm:$0xff] %v1487
    %1520 = vst [vmem:[#allocation3 + $0x38] sm:$0xff] %v1488
    %1521 = vst [vmem:[#allocation3 + $0x40] sm:$0xff] %v1489
    %1522 = vst [vmem:[#allocation3 + $0x48] sm:$0xff] %v1490
    %1523 = vst [vmem:[#allocation3 + $0x50] sm:$0xff] %v1491
    %1524 = vst [vmem:[#allocation3 + $0x58] sm:$0xff] %v1492
    %1525 = vst [vmem:[#allocation3 + $0x60] sm:$0xff] %v1493
    %1526 = vst [vmem:[#allocation3 + $0x68] sm:$0xff] %v1494
    %1527 = vst [vmem:[#allocation3 + $0x70] sm:$0xff] %v1495
    %1528 = vst [vmem:[#allocation3 + $0x78] sm:$0xff] %v1496
    %1529 = vst [vmem:[#allocation3 + $0x80] sm:$0xff] %v1497
    %1530 = vst [vmem:[#allocation3 + $0x88] sm:$0xff] %v1498
    %1531 = vst [vmem:[#allocation3 + $0x90] sm:$0xff] %v1499
    %1532 = vst [vmem:[#allocation3 + $0x98] sm:$0xff] %v1500
    %1533 = vst [vmem:[#allocation3 + $0xa0] sm:$0xff] %v1501
    %1534 = vst [vmem:[#allocation3 + $0xa8] sm:$0xff] %v1502
    %1535 = vst [vmem:[#allocation3 + $0xb0] sm:$0xff] %v1503
    %1536 = vst [vmem:[#allocation3 + $0xb8] sm:$0xff] %v1504
    %1537 = vst [vmem:[#allocation3 + $0xc0] sm:$0xff] %v1505
    %1538 = vst [vmem:[#allocation3 + $0xc8] sm:$0xff] %v1506
    %1539 = vst [vmem:[#allocation3 + $0xd0] sm:$0xff] %v1507
    %1540 = vst [vmem:[#allocation3 + $0xd8] sm:$0xff] %v1508
    %1541 = vst [vmem:[#allocation3 + $0xe0] sm:$0xff] %v1509
    %1542 = vst [vmem:[#allocation3 + $0xe8] sm:$0xff] %v1510
    %1543 = vst [vmem:[#allocation3 + $0xf0] sm:$0xff] %v1511
    %1544 = vst [vmem:[#allocation3 + $0xf8] sm:$0xff] %v1512
    // Predicated region
    $region30: #{tpu_custom_call.1} parent=1 // pred_check
      _
    $region31: #{tpu_custom_call.1} parent=1 // pred_check_branch
      %1546 = sbr.rel (0) target = $region33
    $region32: #{tpu_custom_call.1} parent=1 // pred_region
      %s1548 = ssub.s32 4096, 4096
      %1549 = vsyncadd [#allocation4], %s1548
      %s1550 = sshll.u32 [#allocation3], 4
      %s1551 = int_to_ptr.vmem [resolvable:$true] %s1550
      %1556 = dma.vmem_to_hbm [thread:$0]  %s1551, 4096, %s7, [#allocation4], 128, 128, 8
    $region33: #{tpu_custom_call.1} parent=1 // pred_fallthru
      _
    // Predicated region
    $region34: #{tpu_custom_call.1} parent=1 // pred_check
      _
    $region35: #{tpu_custom_call.1} parent=1 // pred_check_branch
      %1558 = sbr.rel (0) target = $region37
    $region36: #{tpu_custom_call.1} parent=1 // pred_region
      %1559 = dma.done [#allocation4], 4096
    $region37: #{tpu_custom_call.1} parent=1 // pred_fallthru
      _
    %1560 = vsyncpa [#allocation4], 1

</llo_original>
